<compile_context>
chip_gen: v6e
topology: v6e:2x2x1
jax: 0.10.0
libtpu: 0.0.40
codegen_flags: <defaults>
</compile_context>

<pallas_src>
import functools

import jax
import jax.numpy as jnp
from jax.experimental import pallas as pl
from jax.experimental.pallas import tpu as pltpu


def _round_up(v, m=128):
    return ((v + m - 1) // m) * m


# ---------------------------------------------------------------------------
# Fused Pallas kernel: embed -> encoder MLP -> decode linear -> adv head
# (single grid point over the flattened [B*K, Dp] activation)
# ---------------------------------------------------------------------------

def _fused_mae_adv_kernel(
    x_ref,                                   # [M, Dp]  bf16  flattened visible tokens
    we_ref, be_ref,                          # patch embed   [Dp,Ep] bf16, [1,Ep] f32
    w1_ref, b1_ref,                          # encoder fc1   [Ep,Hp] bf16, [1,Hp] f32
    w2_ref, b2_ref,                          # encoder fc2   [Hp,Ep] bf16, [1,Ep] f32
    wd_ref, bd_ref,                          # decoder       [Ep,Dp] bf16, [1,Dp] f32
    wc_ref, bc_ref,                          # adv clf       [Ep,Cp] bf16, [1,Cp] f32
    recon_ref,                               # [M, Dp] bf16  recon of visible tokens
    adv_ref,                                 # [B, Cp] f32   adversarial logits
    *, n_batch, n_keep,
):
    xv = x_ref[...]                                                    # [M, Dp] bf16

    # patch embedding
    tok = (jnp.dot(xv, we_ref[...], preferred_element_type=jnp.float32)
           + be_ref[...])                                              # [M, Ep] f32

    # MLP encoder
    h = jax.nn.gelu(
        jnp.dot(tok.astype(jnp.bfloat16), w1_ref[...],
                preferred_element_type=jnp.float32) + b1_ref[...])     # [M, Hp]
    enc = (jnp.dot(h.astype(jnp.bfloat16), w2_ref[...],
                   preferred_element_type=jnp.float32) + b2_ref[...])  # [M, Ep]
    enc_bf = enc.astype(jnp.bfloat16)

    # decoder: reconstruction of the visible tokens (bf16 writeback)
    recon_ref[...] = (
        jnp.dot(enc_bf, wd_ref[...], preferred_element_type=jnp.float32)
        + bd_ref[...]).astype(jnp.bfloat16)

    # adversarial epilogue: per-sample mean over the K visible-token encodings
    # (ReverseLayerF is identity in the forward pass), then one batched matmul.
    rep = jnp.concatenate(
        [jnp.mean(enc[b * n_keep:(b + 1) * n_keep, :], axis=0, keepdims=True)
         for b in range(n_batch)], axis=0)                             # [B, Ep] f32
    adv_ref[...] = (
        jnp.dot(rep.astype(jnp.bfloat16), wc_ref[...],
                preferred_element_type=jnp.float32) + bc_ref[...])


def fused_mae_adv_call(params, x_flat, n_batch, n_keep):
    """x_flat: [B*K, Dp] bf16 flattened visible raw tokens (lane-padded)."""
    M, Dp = x_flat.shape
    Ep = params["w_embed"].shape[1]
    Hp = params["w_enc1"].shape[1]
    Cp = params["w_clf"].shape[1]

    full2d = lambda i: (0, 0)

    weight_bytes = sum(int(v.size) * int(v.dtype.itemsize) for v in params.values())
    flops = 2 * M * (Dp * Ep + Ep * Hp + Hp * Ep + Ep * Dp) + 2 * n_batch * Ep * Cp
    bytes_accessed = (M * Dp * 2          # input (bf16)
                      + weight_bytes
                      + M * Dp * 2        # recon (bf16)
                      + n_batch * Cp * 4)  # adv logits (f32)

    kernel = functools.partial(_fused_mae_adv_kernel,
                               n_batch=n_batch, n_keep=n_keep)

    return pl.pallas_call(
        kernel,
        out_shape=(
            jax.ShapeDtypeStruct((M, Dp), jnp.bfloat16),      # recon of visible
            jax.ShapeDtypeStruct((n_batch, Cp), jnp.float32),  # adversarial logits
        ),
        grid=(1,),
        in_specs=[
            pl.BlockSpec((M, Dp), full2d),
            pl.BlockSpec((Dp, Ep), full2d), pl.BlockSpec((1, Ep), full2d),
            pl.BlockSpec((Ep, Hp), full2d), pl.BlockSpec((1, Hp), full2d),
            pl.BlockSpec((Hp, Ep), full2d), pl.BlockSpec((1, Ep), full2d),
            pl.BlockSpec((Ep, Dp), full2d), pl.BlockSpec((1, Dp), full2d),
            pl.BlockSpec((Ep, Cp), full2d), pl.BlockSpec((1, Cp), full2d),
        ],
        out_specs=(
            pl.BlockSpec((M, Dp), full2d),
            pl.BlockSpec((n_batch, Cp), full2d),
        ),
        compiler_params=pltpu.CompilerParams(dimension_semantics=("arbitrary",)),
        cost_estimate=pl.CostEstimate(
            flops=flops, transcendentals=4 * M * Hp, bytes_accessed=bytes_accessed),
    )(
        x_flat,
        params["w_embed"], params["b_embed"],
        params["w_enc1"], params["b_enc1"],
        params["w_enc2"], params["b_enc2"],
        params["w_dec"], params["b_dec"],
        params["w_clf"], params["b_clf"],
    )


# ---------------------------------------------------------------------------
# Parameters (lane-padded to 128, weights bf16, biases pre-shaped (1, E) f32)
# ---------------------------------------------------------------------------

def init_params(key, d_in, emb, hidden, n_cls):
    Dp, Ep, Hp, Cp = (_round_up(v) for v in (d_in, emb, hidden, n_cls))
    ks = jax.random.split(key, 6)
    s = 0.02

    def w(k, logical, padded):
        v = jax.random.normal(k, logical, jnp.float32) * s
        v = jnp.pad(v, [(0, p - l) for l, p in zip(logical, padded)])
        return v.astype(jnp.bfloat16)

    return {
        "w_embed": w(ks[0], (d_in, emb), (Dp, Ep)),
        "b_embed": jnp.zeros((1, Ep), jnp.float32),
        "w_enc1": w(ks[1], (emb, hidden), (Ep, Hp)),
        "b_enc1": jnp.zeros((1, Hp), jnp.float32),
        "w_enc2": w(ks[2], (hidden, emb), (Hp, Ep)),
        "b_enc2": jnp.zeros((1, Ep), jnp.float32),
        "mask_token": w(ks[3], (1, emb), (1, Ep)),
        "w_dec": w(ks[4], (emb, d_in), (Ep, Dp)),
        "b_dec": jnp.zeros((1, Dp), jnp.float32),
        "w_clf": w(ks[5], (emb, n_cls), (Ep, Cp)),
        "b_clf": jnp.zeros((1, Cp), jnp.float32),
    }


# ---------------------------------------------------------------------------
# Forward pass (glue: shuffle/unshuffle gathers; everything dense in Pallas)
# ---------------------------------------------------------------------------

@functools.partial(jax.jit, static_argnames=("n_keep", "n_cls"))
def adverserial_autoencoder_forward(params, x, shuffling_idx, restore_idx,
                                    *, n_keep, n_cls):
    B, S, D = x.shape
    Dp = params["b_dec"].shape[1]

    # encode-side shuffle: gather the K visible raw tokens (patch embedding is
    # per-token, so gather-then-embed == embed-then-gather), cast to bf16, pad
    # to 128 lanes and flatten batch x tokens into the matmul M dimension.
    keep_idx = shuffling_idx[:, :n_keep]                                # [B, K]
    x_vis = jnp.take_along_axis(x, keep_idx[..., None], axis=1)         # [B, K, D]
    x_vis = x_vis.astype(jnp.bfloat16)
    x_flat = jnp.pad(x_vis, ((0, 0), (0, 0), (0, Dp - D))).reshape(B * n_keep, Dp)

    recon_flat, adv = fused_mae_adv_call(params, x_flat, B, n_keep)

    recon_vis = recon_flat.reshape(B, n_keep, Dp)[:, :, :D].astype(jnp.float32)

    # batch-invariant mask-token reconstruction: computed once in XLA (hoisted
    # out of the kernel), sliced to D before the concat/gather glue.
    mask_rec = (jnp.dot(params["mask_token"], params["w_dec"],
                        preferred_element_type=jnp.float32)
                + params["b_dec"])[:, :D]                               # [1, D]

    full_shuf = jnp.concatenate(
        [recon_vis,
         jnp.broadcast_to(mask_rec[None, :, :], (B, S - n_keep, D))], axis=1)
    reconstruction = jnp.take_along_axis(
        full_shuf, restore_idx[..., None], axis=1)                      # [B, S, D]

    adv_output = adv[:, :n_cls]                                         # [B, C]
    return reconstruction, adv_output


# ---------------------------------------------------------------------------
# Pure-JAX reference (same bf16-operand / f32-accumulate math) for validation
# ---------------------------------------------------------------------------

def _reference_forward(params, x, shuffling_idx, restore_idx, n_keep, n_cls):
    B, S, D = x.shape
    Dp = params["b_dec"].shape[1]

    def dot32(a, b):
        return jnp.dot(a.astype(jnp.bfloat16), b.astype(jnp.bfloat16),
                       preferred_element_type=jnp.float32)

    keep_idx = shuffling_idx[:, :n_keep]
    x_vis = jnp.take_along_axis(x, keep_idx[..., None], axis=1)
    x_vis = jnp.pad(x_vis, ((0, 0), (0, 0), (0, Dp - D)))

    tok = dot32(x_vis, params["w_embed"]) + params["b_embed"]
    h = jax.nn.gelu(dot32(tok, params["w_enc1"]) + params["b_enc1"])
    enc = dot32(h, params["w_enc2"]) + params["b_enc2"]

    recon_vis = dot32(enc, params["w_dec"]) + params["b_dec"]
    mask_rec = dot32(params["mask_token"], params["w_dec"]) + params["b_dec"]
    full_shuf = jnp.concatenate(
        [recon_vis[:, :, :D],
         jnp.broadcast_to(mask_rec[None, :, :D], (B, S - n_keep, D))], axis=1)
    recon = jnp.take_along_axis(full_shuf, restore_idx[..., None], axis=1)

    rep = enc.mean(axis=1)
    adv = dot32(rep, params["w_clf"]) + params["b_clf"]
    return recon, adv[:, :n_cls]


# ---------------------------------------------------------------------------
# Main
# ---------------------------------------------------------------------------

if __name__ == "__main__":
    B, S, D_IN = 2, 8, 16          # batch, sequence length, input feature dim
    EMB, HIDDEN = 32, 64           # MAE embedding dim, encoder MLP hidden dim
    N_ADV_CLASSES = 4
    MASK_RATIO = 0.5
    N_KEEP = int(S * (1.0 - MASK_RATIO))   # visible tokens per sample

    key = jax.random.PRNGKey(0)
    k_x, k_p, k_shuf = jax.random.split(key, 3)

    x = jax.random.normal(k_x, (B, S, D_IN), jnp.float32)
    params = init_params(k_p, D_IN, EMB, HIDDEN, N_ADV_CLASSES)

    # deterministic per-sample shuffling indices (MAE-style argsort of noise);
    # the inverse permutation is precomputed outside the jitted forward.
    noise = jax.random.uniform(k_shuf, (B, S))
    shuffling_idx = jnp.argsort(noise, axis=1).astype(jnp.int32)
    restore_idx = jnp.argsort(shuffling_idx, axis=1).astype(jnp.int32)

    reconstruction, adv_output = adverserial_autoencoder_forward(
        params, x, shuffling_idx, restore_idx, n_keep=N_KEEP, n_cls=N_ADV_CLASSES)
    jax.block_until_ready((reconstruction, adv_output))

    assert reconstruction.shape == (B, S, D_IN), reconstruction.shape
    assert adv_output.shape == (B, N_ADV_CLASSES), adv_output.shape
    assert reconstruction.dtype == jnp.float32
    assert adv_output.dtype == jnp.float32

    ref_recon, ref_adv = _reference_forward(
        params, x, shuffling_idx, restore_idx, N_KEEP, N_ADV_CLASSES)
    assert jnp.allclose(reconstruction, ref_recon, atol=1e-2, rtol=1e-2)
    assert jnp.allclose(adv_output, ref_adv, atol=1e-2, rtol=1e-2)

    print("KERNEL_OK")
</pallas_src>

<mosaic_0001>
module attributes {stable_mosaic.version = 11 : i64} {
  func.func @_fused_mae_adv_kernel(%arg0: i32, %arg1: memref<8x128xbf16, #tpu.memory_space<vmem>>, %arg2: memref<128x128xbf16, #tpu.memory_space<vmem>>, %arg3: memref<1x128xf32, #tpu.memory_space<vmem>>, %arg4: memref<128x128xbf16, #tpu.memory_space<vmem>>, %arg5: memref<1x128xf32, #tpu.memory_space<vmem>>, %arg6: memref<128x128xbf16, #tpu.memory_space<vmem>>, %arg7: memref<1x128xf32, #tpu.memory_space<vmem>>, %arg8: memref<128x128xbf16, #tpu.memory_space<vmem>>, %arg9: memref<1x128xf32, #tpu.memory_space<vmem>>, %arg10: memref<128x128xbf16, #tpu.memory_space<vmem>>, %arg11: memref<1x128xf32, #tpu.memory_space<vmem>>, %arg12: memref<8x128xbf16, #tpu.memory_space<vmem>>, %arg13: memref<2x128xf32, #tpu.memory_space<vmem>>) attributes {dimension_semantics = [#tpu.dimension_semantics<arbitrary>], iteration_bounds = array<i64: 1>, scalar_prefetch = 0 : i64, scratch_operands = 0 : i64, tpu.core_type = #tpu.core_type<tc>, window_params = [{pipeline_mode = #tpu.pipeline_mode<synchronous>, transform_indices = @transform_0, window_bounds = array<i64: 8, 128>}, {pipeline_mode = #tpu.pipeline_mode<synchronous>, transform_indices = @transform_1, window_bounds = array<i64: 128, 128>}, {pipeline_mode = #tpu.pipeline_mode<synchronous>, transform_indices = @transform_2, window_bounds = array<i64: 1, 128>}, {pipeline_mode = #tpu.pipeline_mode<synchronous>, transform_indices = @transform_3, window_bounds = array<i64: 128, 128>}, {pipeline_mode = #tpu.pipeline_mode<synchronous>, transform_indices = @transform_4, window_bounds = array<i64: 1, 128>}, {pipeline_mode = #tpu.pipeline_mode<synchronous>, transform_indices = @transform_5, window_bounds = array<i64: 128, 128>}, {pipeline_mode = #tpu.pipeline_mode<synchronous>, transform_indices = @transform_6, window_bounds = array<i64: 1, 128>}, {pipeline_mode = #tpu.pipeline_mode<synchronous>, transform_indices = @transform_7, window_bounds = array<i64: 128, 128>}, {pipeline_mode = #tpu.pipeline_mode<synchronous>, transform_indices = @transform_8, window_bounds = array<i64: 1, 128>}, {pipeline_mode = #tpu.pipeline_mode<synchronous>, transform_indices = @transform_9, window_bounds = array<i64: 128, 128>}, {pipeline_mode = #tpu.pipeline_mode<synchronous>, transform_indices = @transform_10, window_bounds = array<i64: 1, 128>}, {pipeline_mode = #tpu.pipeline_mode<synchronous>, transform_indices = @transform_11, window_bounds = array<i64: 8, 128>}, {pipeline_mode = #tpu.pipeline_mode<synchronous>, transform_indices = @transform_12, window_bounds = array<i64: 2, 128>}]} {
    %c0 = arith.constant 0 : index
    %c0_0 = arith.constant 0 : index
    %0 = vector.load %arg1[%c0, %c0_0] : memref<8x128xbf16, #tpu.memory_space<vmem>>, vector<8x128xbf16>
    %c0_1 = arith.constant 0 : index
    %c0_2 = arith.constant 0 : index
    %1 = vector.load %arg2[%c0_1, %c0_2] : memref<128x128xbf16, #tpu.memory_space<vmem>>, vector<128x128xbf16>
    %cst = arith.constant dense<0.000000e+00> : vector<8x128xf32>
    %2 = tpu.matmul %0, %1, %cst {dimension_numbers = #tpu.dot_dimension_numbers<[1], [0], [0], [1], [0, 0, 1, 1], [], []>} : vector<8x128xbf16>, vector<128x128xbf16>, vector<8x128xf32> -> vector<8x128xf32>
    %c0_3 = arith.constant 0 : index
    %c0_4 = arith.constant 0 : index
    %3 = vector.load %arg3[%c0_3, %c0_4] : memref<1x128xf32, #tpu.memory_space<vmem>>, vector<1x128xf32>
    %4 = vector.broadcast %3 : vector<1x128xf32> to vector<8x128xf32>
    %5 = arith.addf %2, %4 : vector<8x128xf32>
    %6 = arith.truncf %5 : vector<8x128xf32> to vector<8x128xbf16>
    %c0_5 = arith.constant 0 : index
    %c0_6 = arith.constant 0 : index
    %7 = vector.load %arg4[%c0_5, %c0_6] : memref<128x128xbf16, #tpu.memory_space<vmem>>, vector<128x128xbf16>
    %cst_7 = arith.constant dense<0.000000e+00> : vector<8x128xf32>
    %8 = tpu.matmul %6, %7, %cst_7 {dimension_numbers = #tpu.dot_dimension_numbers<[1], [0], [0], [1], [0, 0, 1, 1], [], []>} : vector<8x128xbf16>, vector<128x128xbf16>, vector<8x128xf32> -> vector<8x128xf32>
    %c0_8 = arith.constant 0 : index
    %c0_9 = arith.constant 0 : index
    %9 = vector.load %arg5[%c0_8, %c0_9] : memref<1x128xf32, #tpu.memory_space<vmem>>, vector<1x128xf32>
    %10 = vector.broadcast %9 : vector<1x128xf32> to vector<8x128xf32>
    %11 = arith.addf %8, %10 : vector<8x128xf32>
    %12 = arith.mulf %11, %11 : vector<8x128xf32>
    %13 = arith.mulf %11, %12 : vector<8x128xf32>
    %cst_10 = arith.constant 4.471500e-02 : f32
    %14 = vector.broadcast %cst_10 : f32 to vector<8x128xf32>
    %15 = arith.mulf %14, %13 : vector<8x128xf32>
    %16 = arith.addf %11, %15 : vector<8x128xf32>
    %cst_11 = arith.constant 0.797884583 : f32
    %17 = vector.broadcast %cst_11 : f32 to vector<8x128xf32>
    %18 = arith.mulf %17, %16 : vector<8x128xf32>
    %19 = math.tanh %18 : vector<8x128xf32>
    %cst_12 = arith.constant 1.000000e+00 : f32
    %20 = vector.broadcast %cst_12 : f32 to vector<8x128xf32>
    %21 = arith.addf %20, %19 : vector<8x128xf32>
    %cst_13 = arith.constant 5.000000e-01 : f32
    %22 = vector.broadcast %cst_13 : f32 to vector<8x128xf32>
    %23 = arith.mulf %22, %21 : vector<8x128xf32>
    %24 = arith.mulf %11, %23 : vector<8x128xf32>
    %25 = arith.truncf %24 : vector<8x128xf32> to vector<8x128xbf16>
    %c0_14 = arith.constant 0 : index
    %c0_15 = arith.constant 0 : index
    %26 = vector.load %arg6[%c0_14, %c0_15] : memref<128x128xbf16, #tpu.memory_space<vmem>>, vector<128x128xbf16>
    %cst_16 = arith.constant dense<0.000000e+00> : vector<8x128xf32>
    %27 = tpu.matmul %25, %26, %cst_16 {dimension_numbers = #tpu.dot_dimension_numbers<[1], [0], [0], [1], [0, 0, 1, 1], [], []>} : vector<8x128xbf16>, vector<128x128xbf16>, vector<8x128xf32> -> vector<8x128xf32>
    %c0_17 = arith.constant 0 : index
    %c0_18 = arith.constant 0 : index
    %28 = vector.load %arg7[%c0_17, %c0_18] : memref<1x128xf32, #tpu.memory_space<vmem>>, vector<1x128xf32>
    %29 = vector.broadcast %28 : vector<1x128xf32> to vector<8x128xf32>
    %30 = arith.addf %27, %29 : vector<8x128xf32>
    %31 = arith.truncf %30 : vector<8x128xf32> to vector<8x128xbf16>
    %c0_19 = arith.constant 0 : index
    %c0_20 = arith.constant 0 : index
    %32 = vector.load %arg8[%c0_19, %c0_20] : memref<128x128xbf16, #tpu.memory_space<vmem>>, vector<128x128xbf16>
    %cst_21 = arith.constant dense<0.000000e+00> : vector<8x128xf32>
    %33 = tpu.matmul %31, %32, %cst_21 {dimension_numbers = #tpu.dot_dimension_numbers<[1], [0], [0], [1], [0, 0, 1, 1], [], []>} : vector<8x128xbf16>, vector<128x128xbf16>, vector<8x128xf32> -> vector<8x128xf32>
    %c0_22 = arith.constant 0 : index
    %c0_23 = arith.constant 0 : index
    %34 = vector.load %arg9[%c0_22, %c0_23] : memref<1x128xf32, #tpu.memory_space<vmem>>, vector<1x128xf32>
    %35 = vector.broadcast %34 : vector<1x128xf32> to vector<8x128xf32>
    %36 = arith.addf %33, %35 : vector<8x128xf32>
    %37 = arith.truncf %36 : vector<8x128xf32> to vector<8x128xbf16>
    %c0_24 = arith.constant 0 : index
    %c0_25 = arith.constant 0 : index
    %38 = vector.load %arg12[%c0_24, %c0_25] : memref<8x128xbf16, #tpu.memory_space<vmem>>, vector<8x128xbf16>
    tpu.vector_store %arg12[%c0_24, %c0_25], %37 {strides = array<i32>} : memref<8x128xbf16, #tpu.memory_space<vmem>>, vector<8x128xbf16>,
    %39 = vector.extract_strided_slice %30 {offsets = [0, 0], sizes = [4, 128], strides = [1, 1]} : vector<8x128xf32> to vector<4x128xf32>
    %cst_26 = arith.constant dense<0.000000e+00> : vector<128xf32>
    %40 = vector.multi_reduction <add>, %39, %cst_26 [0] : vector<4x128xf32> to vector<128xf32>
    %41 = vector.shape_cast %40 : vector<128xf32> to vector<1x128xf32>
    %cst_27 = arith.constant 4.000000e+00 : f32
    %42 = vector.broadcast %cst_27 : f32 to vector<1x128xf32>
    %43 = arith.divf %41, %42 : vector<1x128xf32>
    %44 = vector.extract_strided_slice %30 {offsets = [4, 0], sizes = [4, 128], strides = [1, 1]} : vector<8x128xf32> to vector<4x128xf32>
    %cst_28 = arith.constant dense<0.000000e+00> : vector<128xf32>
    %45 = vector.multi_reduction <add>, %44, %cst_28 [0] : vector<4x128xf32> to vector<128xf32>
    %46 = vector.shape_cast %45 : vector<128xf32> to vector<1x128xf32>
    %cst_29 = arith.constant 4.000000e+00 : f32
    %47 = vector.broadcast %cst_29 : f32 to vector<1x128xf32>
    %48 = arith.divf %46, %47 : vector<1x128xf32>
    %49 = tpu.concatenate %43, %48 in 0 : vector<1x128xf32>, vector<1x128xf32> -> vector<2x128xf32>
    %50 = arith.truncf %49 : vector<2x128xf32> to vector<2x128xbf16>
    %c0_30 = arith.constant 0 : index
    %c0_31 = arith.constant 0 : index
    %51 = vector.load %arg10[%c0_30, %c0_31] : memref<128x128xbf16, #tpu.memory_space<vmem>>, vector<128x128xbf16>
    %cst_32 = arith.constant dense<0.000000e+00> : vector<2x128xf32>
    %52 = tpu.matmul %50, %51, %cst_32 {dimension_numbers = #tpu.dot_dimension_numbers<[1], [0], [0], [1], [0, 0, 1, 1], [], []>} : vector<2x128xbf16>, vector<128x128xbf16>, vector<2x128xf32> -> vector<2x128xf32>
    %c0_33 = arith.constant 0 : index
    %c0_34 = arith.constant 0 : index
    %53 = vector.load %arg11[%c0_33, %c0_34] : memref<1x128xf32, #tpu.memory_space<vmem>>, vector<1x128xf32>
    %54 = vector.broadcast %53 : vector<1x128xf32> to vector<2x128xf32>
    %55 = arith.addf %52, %54 : vector<2x128xf32>
    %c0_35 = arith.constant 0 : index
    %c0_36 = arith.constant 0 : index
    %56 = vector.load %arg13[%c0_35, %c0_36] : memref<2x128xf32, #tpu.memory_space<vmem>>, vector<2x128xf32>
    tpu.vector_store %arg13[%c0_35, %c0_36], %55 {strides = array<i32>} : memref<2x128xf32, #tpu.memory_space<vmem>>, vector<2x128xf32>,
    return
  }
  func.func @transform_0(%arg0: i32) -> (i32, i32) {
    %c0_i32 = arith.constant 0 : i32
    %c0_i32_0 = arith.constant 0 : i32
    %c0_i32_1 = arith.constant 0 : i32
    return %c0_i32, %c0_i32_0 : i32, i32
  }
  func.func @transform_1(%arg0: i32) -> (i32, i32) {
    %c0_i32 = arith.constant 0 : i32
    %c0_i32_0 = arith.constant 0 : i32
    %c0_i32_1 = arith.constant 0 : i32
    return %c0_i32, %c0_i32_0 : i32, i32
  }
  func.func @transform_2(%arg0: i32) -> (i32, i32) {
    %c0_i32 = arith.constant 0 : i32
    %c0_i32_0 = arith.constant 0 : i32
    %c0_i32_1 = arith.constant 0 : i32
    return %c0_i32, %c0_i32_0 : i32, i32
  }
  func.func @transform_3(%arg0: i32) -> (i32, i32) {
    %c0_i32 = arith.constant 0 : i32
    %c0_i32_0 = arith.constant 0 : i32
    %c0_i32_1 = arith.constant 0 : i32
    return %c0_i32, %c0_i32_0 : i32, i32
  }
  func.func @transform_4(%arg0: i32) -> (i32, i32) {
    %c0_i32 = arith.constant 0 : i32
    %c0_i32_0 = arith.constant 0 : i32
    %c0_i32_1 = arith.constant 0 : i32
    return %c0_i32, %c0_i32_0 : i32, i32
  }
  func.func @transform_5(%arg0: i32) -> (i32, i32) {
    %c0_i32 = arith.constant 0 : i32
    %c0_i32_0 = arith.constant 0 : i32
    %c0_i32_1 = arith.constant 0 : i32
    return %c0_i32, %c0_i32_0 : i32, i32
  }
  func.func @transform_6(%arg0: i32) -> (i32, i32) {
    %c0_i32 = arith.constant 0 : i32
    %c0_i32_0 = arith.constant 0 : i32
    %c0_i32_1 = arith.constant 0 : i32
    return %c0_i32, %c0_i32_0 : i32, i32
  }
  func.func @transform_7(%arg0: i32) -> (i32, i32) {
    %c0_i32 = arith.constant 0 : i32
    %c0_i32_0 = arith.constant 0 : i32
    %c0_i32_1 = arith.constant 0 : i32
    return %c0_i32, %c0_i32_0 : i32, i32
  }
  func.func @transform_8(%arg0: i32) -> (i32, i32) {
    %c0_i32 = arith.constant 0 : i32
    %c0_i32_0 = arith.constant 0 : i32
    %c0_i32_1 = arith.constant 0 : i32
    return %c0_i32, %c0_i32_0 : i32, i32
  }
  func.func @transform_9(%arg0: i32) -> (i32, i32) {
    %c0_i32 = arith.constant 0 : i32
    %c0_i32_0 = arith.constant 0 : i32
    %c0_i32_1 = arith.constant 0 : i32
    return %c0_i32, %c0_i32_0 : i32, i32
  }
  func.func @transform_10(%arg0: i32) -> (i32, i32) {
    %c0_i32 = arith.constant 0 : i32
    %c0_i32_0 = arith.constant 0 : i32
    %c0_i32_1 = arith.constant 0 : i32
    return %c0_i32, %c0_i32_0 : i32, i32
  }
  func.func @transform_11(%arg0: i32) -> (i32, i32) {
    %c0_i32 = arith.constant 0 : i32
    %c0_i32_0 = arith.constant 0 : i32
    %c0_i32_1 = arith.constant 0 : i32
    return %c0_i32, %c0_i32_0 : i32, i32
  }
  func.func @transform_12(%arg0: i32) -> (i32, i32) {
    %c0_i32 = arith.constant 0 : i32
    %c0_i32_0 = arith.constant 0 : i32
    %c0_i32_1 = arith.constant 0 : i32
    return %c0_i32, %c0_i32_0 : i32, i32
  }
}

</mosaic_0001>

<llo_original>
// kernel: adverserial_autoencoder_forward.1
$region0: #{adverserial_autoencoder_forward.1}
  #allocation0 [shape = 'u32[]', space=smem, size = 0x4, offset = 0x4, fixed_abs, tag = 'smem constant byte address 0x4 - core index']
  #allocation1 [shape = 'u32[144,128]{1,0:T(1,128)}', space=vmem, size = 0x12000, scoped, tag = 'internal scratch']
  %s0 = inlined_call_operand.vmem [shape: bf16[8,128], index: 0, kind: input, shape index: {}]
  %s1 = inlined_call_operand.hbm [shape: bf16[128,128], index: 1, kind: input, shape index: {}]
  %s2 = inlined_call_operand.vmem [shape: f32[1,128], index: 2, kind: input, shape index: {}]
  %s3 = inlined_call_operand.hbm [shape: bf16[128,128], index: 3, kind: input, shape index: {}]
  %s4 = inlined_call_operand.vmem [shape: f32[1,128], index: 4, kind: input, shape index: {}]
  %s5 = inlined_call_operand.hbm [shape: bf16[128,128], index: 5, kind: input, shape index: {}]
  %s6 = inlined_call_operand.vmem [shape: f32[1,128], index: 6, kind: input, shape index: {}]
  %s7 = inlined_call_operand.vmem [shape: bf16[128,128], index: 7, kind: input, shape index: {}]
  %s8 = inlined_call_operand.vmem [shape: f32[1,128], index: 8, kind: input, shape index: {}]
  %s9 = inlined_call_operand.hbm [shape: bf16[128,128], index: 9, kind: input, shape index: {}]
  %s10 = inlined_call_operand.vmem [shape: f32[1,128], index: 10, kind: input, shape index: {}]
  %s11 = inlined_call_operand.vmem [shape: bf16[8,128], index: 11, kind: output, shape index: {0}]
  %s12 = inlined_call_operand.hbm [shape: f32[2,128], index: 12, kind: output, shape index: {1}]
  %13 = xla_tuple %s11, %s12
  %s14 = sld [smem:[#allocation0]]
  $region78: #{adverserial_autoencoder_forward.1} parent=0
    _
  %s16 = ssub.s32 1, %s14
  %s17 = scalar_select 0, %s16, %s14
  $region1: #{adverserial_autoencoder_forward.1} parent=0
    #allocation2 [shape = 'u8[32768]{0}', space=vmem, size = 0x8000, scoped, tag = 'input window, operand 1, single buffered']
    #allocation3 [shape = 's32[1]{0}', space=sflag, size = 0x4, scoped, tag = 'scoped memory for adverserial_autoencoder_forward.1']
    #allocation4 [shape = 's32[1]{0}', space=sflag, size = 0x4, scoped, tag = 'scoped memory for adverserial_autoencoder_forward.1']
    #allocation5 [shape = 'u8[32768]{0}', space=vmem, size = 0x8000, scoped, tag = 'input window, operand 3, single buffered']
    #allocation6 [shape = 's32[1]{0}', space=sflag, size = 0x4, scoped, tag = 'scoped memory for adverserial_autoencoder_forward.1']
    #allocation7 [shape = 'u8[32768]{0}', space=vmem, size = 0x8000, scoped, tag = 'input window, operand 5, single buffered']
    #allocation8 [shape = 'u8[32768]{0}', space=vmem, size = 0x8000, scoped, tag = 'input window, operand 9, single buffered']
    #allocation9 [shape = 's32[1]{0}', space=sflag, size = 0x4, scoped, tag = 'scoped memory for adverserial_autoencoder_forward.1']
    #allocation10 [shape = 'u8[1024]{0}', space=vmem, size = 0x400, scoped, tag = 'output window, operand 1, single buffered']
    %18 = vsyncpa [#allocation3], 0
    %19 = vsyncpa [#allocation6], 0
    %20 = vsyncpa [#allocation9], 0
    %21 = vsyncpa [#allocation4], 0
    // Predicated region
    $region2: #{adverserial_autoencoder_forward.1} parent=1 // pred_check
      _
    $region3: #{adverserial_autoencoder_forward.1} parent=1 // pred_check_branch
      %23 = sbr.rel (0) target = $region5
    $region4: #{adverserial_autoencoder_forward.1} parent=1 // pred_region
      _
    $region5: #{adverserial_autoencoder_forward.1} parent=1 // pred_fallthru
      _
    // Predicated region
    $region6: #{adverserial_autoencoder_forward.1} parent=1 // pred_check
      _
    $region7: #{adverserial_autoencoder_forward.1} parent=1 // pred_check_branch
      %25 = sbr.rel (0) target = $region9
    $region8: #{adverserial_autoencoder_forward.1} parent=1 // pred_region
      %s27 = ssub.s32 1024, 1024
      %28 = vsyncadd [#allocation3], %s27
      %s29 = sshll.u32 [#allocation2], 4
      %s30 = int_to_ptr.vmem [resolvable:$true] %s29
      %35 = dma.hbm_to_vmem [thread:$0]  %s1, 1024, %s30, [#allocation3], 64, 64, 4
    $region9: #{adverserial_autoencoder_forward.1} parent=1 // pred_fallthru
      _
    // Predicated region
    $region10: #{adverserial_autoencoder_forward.1} parent=1 // pred_check
      _
    $region11: #{adverserial_autoencoder_forward.1} parent=1 // pred_check_branch
      %37 = sbr.rel (0) target = $region13
    $region12: #{adverserial_autoencoder_forward.1} parent=1 // pred_region
      _
    $region13: #{adverserial_autoencoder_forward.1} parent=1 // pred_fallthru
      _
    // Predicated region
    $region14: #{adverserial_autoencoder_forward.1} parent=1 // pred_check
      _
    $region15: #{adverserial_autoencoder_forward.1} parent=1 // pred_check_branch
      %39 = sbr.rel (0) target = $region17
    $region16: #{adverserial_autoencoder_forward.1} parent=1 // pred_region
      %s41 = ssub.s32 1024, 1024
      %42 = vsyncadd [#allocation6], %s41
      %s43 = sshll.u32 [#allocation5], 4
      %s44 = int_to_ptr.vmem [resolvable:$true] %s43
      %49 = dma.hbm_to_vmem [thread:$0]  %s3, 1024, %s44, [#allocation6], 64, 64, 4
    $region17: #{adverserial_autoencoder_forward.1} parent=1 // pred_fallthru
      _
    // Predicated region
    $region18: #{adverserial_autoencoder_forward.1} parent=1 // pred_check
      _
    $region19: #{adverserial_autoencoder_forward.1} parent=1 // pred_check_branch
      %51 = sbr.rel (0) target = $region21
    $region20: #{adverserial_autoencoder_forward.1} parent=1 // pred_region
      _
    $region21: #{adverserial_autoencoder_forward.1} parent=1 // pred_fallthru
      _
    // Predicated region
    $region22: #{adverserial_autoencoder_forward.1} parent=1 // pred_check
      _
    $region23: #{adverserial_autoencoder_forward.1} parent=1 // pred_check_branch
      %53 = sbr.rel (0) target = $region25
    $region24: #{adverserial_autoencoder_forward.1} parent=1 // pred_region
      %s55 = ssub.s32 1024, 1024
      %56 = vsyncadd [#allocation6], %s55
      %s57 = sshll.u32 [#allocation7], 4
      %s58 = int_to_ptr.vmem [resolvable:$true] %s57
      %63 = dma.hbm_to_vmem [thread:$0]  %s5, 1024, %s58, [#allocation6], 64, 64, 4
    $region25: #{adverserial_autoencoder_forward.1} parent=1 // pred_fallthru
      _
    // Predicated region
    $region26: #{adverserial_autoencoder_forward.1} parent=1 // pred_check
      _
    $region27: #{adverserial_autoencoder_forward.1} parent=1 // pred_check_branch
      %65 = sbr.rel (0) target = $region29
    $region28: #{adverserial_autoencoder_forward.1} parent=1 // pred_region
      _
    $region29: #{adverserial_autoencoder_forward.1} parent=1 // pred_fallthru
      _
    // Predicated region
    $region30: #{adverserial_autoencoder_forward.1} parent=1 // pred_check
      _
    $region31: #{adverserial_autoencoder_forward.1} parent=1 // pred_check_branch
      %67 = sbr.rel (0) target = $region33
    $region32: #{adverserial_autoencoder_forward.1} parent=1 // pred_region
      _
    $region33: #{adverserial_autoencoder_forward.1} parent=1 // pred_fallthru
      _
    // Predicated region
    $region34: #{adverserial_autoencoder_forward.1} parent=1 // pred_check
      _
    $region35: #{adverserial_autoencoder_forward.1} parent=1 // pred_check_branch
      %69 = sbr.rel (0) target = $region37
    $region36: #{adverserial_autoencoder_forward.1} parent=1 // pred_region
      _
    $region37: #{adverserial_autoencoder_forward.1} parent=1 // pred_fallthru
      _
    // Predicated region
    $region38: #{adverserial_autoencoder_forward.1} parent=1 // pred_check
      _
    $region39: #{adverserial_autoencoder_forward.1} parent=1 // pred_check_branch
      %71 = sbr.rel (0) target = $region41
    $region40: #{adverserial_autoencoder_forward.1} parent=1 // pred_region
      %s73 = ssub.s32 1024, 1024
      %74 = vsyncadd [#allocation9], %s73
      %s75 = sshll.u32 [#allocation8], 4
      %s76 = int_to_ptr.vmem [resolvable:$true] %s75
      %81 = dma.hbm_to_vmem [thread:$0]  %s9, 1024, %s76, [#allocation9], 64, 64, 4
    $region41: #{adverserial_autoencoder_forward.1} parent=1 // pred_fallthru
      _
    // Predicated region
    $region42: #{adverserial_autoencoder_forward.1} parent=1 // pred_check
      _
    $region43: #{adverserial_autoencoder_forward.1} parent=1 // pred_check_branch
      %83 = sbr.rel (0) target = $region45
    $region44: #{adverserial_autoencoder_forward.1} parent=1 // pred_region
      _
    $region45: #{adverserial_autoencoder_forward.1} parent=1 // pred_fallthru
      _
    // Predicated region
    $region46: #{adverserial_autoencoder_forward.1} parent=1 // pred_check
      _
    $region47: #{adverserial_autoencoder_forward.1} parent=1 // pred_check_branch
      %85 = sbr.rel (0) target = $region49
    $region48: #{adverserial_autoencoder_forward.1} parent=1 // pred_region
      %86 = dma.done [#allocation3], 1024
    $region49: #{adverserial_autoencoder_forward.1} parent=1 // pred_fallthru
      _
    // Predicated region
    $region50: #{adverserial_autoencoder_forward.1} parent=1 // pred_check
      _
    $region51: #{adverserial_autoencoder_forward.1} parent=1 // pred_check_branch
      %88 = sbr.rel (0) target = $region53
    $region52: #{adverserial_autoencoder_forward.1} parent=1 // pred_region
      %89 = dma.done [#allocation6], 1024
    $region53: #{adverserial_autoencoder_forward.1} parent=1 // pred_fallthru
      _
    // Predicated region
    $region54: #{adverserial_autoencoder_forward.1} parent=1 // pred_check
      _
    $region55: #{adverserial_autoencoder_forward.1} parent=1 // pred_check_branch
      %91 = sbr.rel (0) target = $region57
    $region56: #{adverserial_autoencoder_forward.1} parent=1 // pred_region
      %92 = dma.done [#allocation6], 1024
    $region57: #{adverserial_autoencoder_forward.1} parent=1 // pred_fallthru
      _
    // Predicated region
    $region58: #{adverserial_autoencoder_forward.1} parent=1 // pred_check
      _
    $region59: #{adverserial_autoencoder_forward.1} parent=1 // pred_check_branch
      %94 = sbr.rel (0) target = $region61
    $region60: #{adverserial_autoencoder_forward.1} parent=1 // pred_region
      %95 = dma.done [#allocation9], 1024
    $region61: #{adverserial_autoencoder_forward.1} parent=1 // pred_fallthru
      _
    %v97 = vld [vmem:[%s0] sm:$0xf]
    %v98 = vld [vmem:[#allocation2] sm:$0xf]
    %v99 = vld [vmem:[#allocation2 + $0x4] sm:$0xf]
    %v100 = vld [vmem:[#allocation2 + $0x8] sm:$0xf]
    %v101 = vld [vmem:[#allocation2 + $0xc] sm:$0xf]
    %v102 = vld [vmem:[#allocation2 + $0x10] sm:$0xf]
    %v103 = vld [vmem:[#allocation2 + $0x14] sm:$0xf]
    %v104 = vld [vmem:[#allocation2 + $0x18] sm:$0xf]
    %v105 = vld [vmem:[#allocation2 + $0x1c] sm:$0xf]
    %v106 = vld [vmem:[#allocation2 + $0x20] sm:$0xf]
    %v107 = vld [vmem:[#allocation2 + $0x24] sm:$0xf]
    %v108 = vld [vmem:[#allocation2 + $0x28] sm:$0xf]
    %v109 = vld [vmem:[#allocation2 + $0x2c] sm:$0xf]
    %v110 = vld [vmem:[#allocation2 + $0x30] sm:$0xf]
    %v111 = vld [vmem:[#allocation2 + $0x34] sm:$0xf]
    %v112 = vld [vmem:[#allocation2 + $0x38] sm:$0xf]
    %v113 = vld [vmem:[#allocation2 + $0x3c] sm:$0xf]
    %v114 = vld [vmem:[%s2] sm:$0x1]
    %v116 = vlaneseq
    %v117 = vshrl.u32 %v116, 7
    %v118 = vsub.s32 0, %v117
    %v119 = vrot.slane %v114, %v118
    %v137 = vunpack.c.l.b16 %v98
    %v138 = vunpack.c.l.b16 %v99
    %v139 = vunpack.c.l.b16 %v100
    %v140 = vunpack.c.l.b16 %v101
    %v141 = vunpack.c.l.b16 %v102
    %v142 = vunpack.c.l.b16 %v103
    %v143 = vunpack.c.l.b16 %v104
    %v144 = vunpack.c.l.b16 %v105
    %v145 = vunpack.c.l.b16 %v106
    %v146 = vunpack.c.l.b16 %v107
    %v147 = vunpack.c.l.b16 %v108
    %v148 = vunpack.c.l.b16 %v109
    %v149 = vunpack.c.l.b16 %v110
    %v150 = vunpack.c.l.b16 %v111
    %v151 = vunpack.c.l.b16 %v112
    %v152 = vunpack.c.l.b16 %v113
    %v153 = vpack.c.b16 %v138, %v137
    %v154 = vpack.c.b16 %v140, %v139
    %v155 = vpack.c.b16 %v142, %v141
    %v156 = vpack.c.b16 %v144, %v143
    %v157 = vpack.c.b16 %v146, %v145
    %v158 = vpack.c.b16 %v148, %v147
    %v159 = vpack.c.b16 %v150, %v149
    %v160 = vpack.c.b16 %v152, %v151
    %169 = vmatprep.subr.bf16.mxu0 0
    %170 = vmatpush1.bf16.msra.mxu0 %v160
    %171 = vmatprep.subr.bf16.mxu0 0
    %172 = vmatpush1.bf16.msra.mxu0 %v159
    %173 = vmatprep.subr.bf16.mxu0 0
    %174 = vmatpush1.bf16.msra.mxu0 %v158
    %175 = vmatprep.subr.bf16.mxu0 0
    %176 = vmatpush1.bf16.msra.mxu0 %v157
    %177 = vmatprep.subr.bf16.mxu0 0
    %178 = vmatpush1.bf16.msra.mxu0 %v156
    %179 = vmatprep.subr.bf16.mxu0 0
    %180 = vmatpush1.bf16.msra.mxu0 %v155
    %181 = vmatprep.subr.bf16.mxu0 0
    %182 = vmatpush1.bf16.msra.mxu0 %v154
    %183 = vmatprep.subr.bf16.mxu0 0
    %184 = vmatpush1.bf16.msra.mxu0 %v153
    %185 = vmatprep.subr.bf16.mxu0 0
    %186 = vmatpush2.bf16.msra.mxu0 0
    %187 = vmatprep.subr.bf16.mxu0 0
    %188 = vmatpush2.bf16.msra.mxu0 0
    %189 = vmatprep.subr.bf16.mxu0 0
    %190 = vmatpush2.bf16.msra.mxu0 0
    %191 = vmatprep.subr.bf16.mxu0 0
    %192 = vmatpush2.bf16.msra.mxu0 0
    %193 = vmatprep.subr.bf16.mxu0 0
    %194 = vmatpush2.bf16.msra.mxu0 0
    %195 = vmatprep.subr.bf16.mxu0 0
    %196 = vmatpush2.bf16.msra.mxu0 0
    %197 = vmatprep.subr.bf16.mxu0 0
    %198 = vmatpush2.bf16.msra.mxu0 0
    %199 = vmatprep.subr.bf16.mxu0 0
    %200 = vmatpush2.bf16.msra.mxu0 0
    %201 = vmatprep.mubr.bf16.mxu0 0
    %202 = vmatmul.mubr.bf16.gmra.mxu0 %v97
    %v203 = vpop.f32.mrf.mxu0
    %v204 = vadd.f32 %v119, %v203
    %v205 = vpop.f32.mrf.mxu0
    %v206 = vpop.f32.mrf.mxu0
    %v207 = vpop.f32.mrf.mxu0
    %208 = vdwg.mxu0
    %v209 = vpack.c.bf16 %v204, %v204
    %v210 = vld [vmem:[#allocation5] sm:$0xf]
    %v211 = vld [vmem:[#allocation5 + $0x4] sm:$0xf]
    %v212 = vld [vmem:[#allocation5 + $0x8] sm:$0xf]
    %v213 = vld [vmem:[#allocation5 + $0xc] sm:$0xf]
    %v214 = vld [vmem:[#allocation5 + $0x10] sm:$0xf]
    %v215 = vld [vmem:[#allocation5 + $0x14] sm:$0xf]
    %v216 = vld [vmem:[#allocation5 + $0x18] sm:$0xf]
    %v217 = vld [vmem:[#allocation5 + $0x1c] sm:$0xf]
    %v218 = vld [vmem:[#allocation5 + $0x20] sm:$0xf]
    %v219 = vld [vmem:[#allocation5 + $0x24] sm:$0xf]
    %v220 = vld [vmem:[#allocation5 + $0x28] sm:$0xf]
    %v221 = vld [vmem:[#allocation5 + $0x2c] sm:$0xf]
    %v222 = vld [vmem:[#allocation5 + $0x30] sm:$0xf]
    %v223 = vld [vmem:[#allocation5 + $0x34] sm:$0xf]
    %v224 = vld [vmem:[#allocation5 + $0x38] sm:$0xf]
    %v225 = vld [vmem:[#allocation5 + $0x3c] sm:$0xf]
    %v226 = vld [vmem:[%s4] sm:$0x1]
    %v228 = vlaneseq
    %v229 = vshrl.u32 %v228, 7
    %v230 = vsub.s32 0, %v229
    %v231 = vrot.slane %v226, %v230
    %v249 = vunpack.c.l.b16 %v210
    %v250 = vunpack.c.l.b16 %v211
    %v251 = vunpack.c.l.b16 %v212
    %v252 = vunpack.c.l.b16 %v213
    %v253 = vunpack.c.l.b16 %v214
    %v254 = vunpack.c.l.b16 %v215
    %v255 = vunpack.c.l.b16 %v216
    %v256 = vunpack.c.l.b16 %v217
    %v257 = vunpack.c.l.b16 %v218
    %v258 = vunpack.c.l.b16 %v219
    %v259 = vunpack.c.l.b16 %v220
    %v260 = vunpack.c.l.b16 %v221
    %v261 = vunpack.c.l.b16 %v222
    %v262 = vunpack.c.l.b16 %v223
    %v263 = vunpack.c.l.b16 %v224
    %v264 = vunpack.c.l.b16 %v225
    %v265 = vpack.c.b16 %v250, %v249
    %v266 = vpack.c.b16 %v252, %v251
    %v267 = vpack.c.b16 %v254, %v253
    %v268 = vpack.c.b16 %v256, %v255
    %v269 = vpack.c.b16 %v258, %v257
    %v270 = vpack.c.b16 %v260, %v259
    %v271 = vpack.c.b16 %v262, %v261
    %v272 = vpack.c.b16 %v264, %v263
    %281 = vmatprep.subr.bf16.mxu0 0
    %282 = vmatpush1.bf16.msra.mxu0 %v272
    %283 = vmatprep.subr.bf16.mxu0 0
    %284 = vmatpush1.bf16.msra.mxu0 %v271
    %285 = vmatprep.subr.bf16.mxu0 0
    %286 = vmatpush1.bf16.msra.mxu0 %v270
    %287 = vmatprep.subr.bf16.mxu0 0
    %288 = vmatpush1.bf16.msra.mxu0 %v269
    %289 = vmatprep.subr.bf16.mxu0 0
    %290 = vmatpush1.bf16.msra.mxu0 %v268
    %291 = vmatprep.subr.bf16.mxu0 0
    %292 = vmatpush1.bf16.msra.mxu0 %v267
    %293 = vmatprep.subr.bf16.mxu0 0
    %294 = vmatpush1.bf16.msra.mxu0 %v266
    %295 = vmatprep.subr.bf16.mxu0 0
    %296 = vmatpush1.bf16.msra.mxu0 %v265
    %297 = vmatprep.subr.bf16.mxu0 0
    %298 = vmatpush2.bf16.msra.mxu0 0
    %299 = vmatprep.subr.bf16.mxu0 0
    %300 = vmatpush2.bf16.msra.mxu0 0
    %301 = vmatprep.subr.bf16.mxu0 0
    %302 = vmatpush2.bf16.msra.mxu0 0
    %303 = vmatprep.subr.bf16.mxu0 0
    %304 = vmatpush2.bf16.msra.mxu0 0
    %305 = vmatprep.subr.bf16.mxu0 0
    %306 = vmatpush2.bf16.msra.mxu0 0
    %307 = vmatprep.subr.bf16.mxu0 0
    %308 = vmatpush2.bf16.msra.mxu0 0
    %309 = vmatprep.subr.bf16.mxu0 0
    %310 = vmatpush2.bf16.msra.mxu0 0
    %311 = vmatprep.subr.bf16.mxu0 0
    %312 = vmatpush2.bf16.msra.mxu0 0
    %313 = vmatprep.mubr.bf16.mxu0 0
    %314 = vmatmul.mubr.bf16.gmra.mxu0 %v209
    %v315 = vpop.f32.mrf.mxu0
    %v316 = vadd.f32 %v231, %v315
    %v317 = vpop.f32.mrf.mxu0
    %v318 = vpop.f32.mrf.mxu0
    %v319 = vpop.f32.mrf.mxu0
    %320 = vdwg.mxu0
    %v321 = vmul.f32 %v316, %v316
    %v322 = vmul.f32 %v316, %v321
    %v323 = vmul.f32 %v322, 0.044715
    %v324 = vadd.f32 %v316, %v323
    %v325 = vmul.f32 %v324, 0.7978846
    %v326 = vtanh.pop %v325
    %v327 = vadd.f32 %v326, 1.0
    %v328 = vmul.f32 %v327, 0.5
    %v329 = vmul.f32 %v316, %v328
    %v330 = vpack.c.bf16 %v329, %v329
    %v331 = vld [vmem:[#allocation7] sm:$0xf]
    %v332 = vld [vmem:[#allocation7 + $0x4] sm:$0xf]
    %v333 = vld [vmem:[#allocation7 + $0x8] sm:$0xf]
    %v334 = vld [vmem:[#allocation7 + $0xc] sm:$0xf]
    %v335 = vld [vmem:[#allocation7 + $0x10] sm:$0xf]
    %v336 = vld [vmem:[#allocation7 + $0x14] sm:$0xf]
    %v337 = vld [vmem:[#allocation7 + $0x18] sm:$0xf]
    %v338 = vld [vmem:[#allocation7 + $0x1c] sm:$0xf]
    %v339 = vld [vmem:[#allocation7 + $0x20] sm:$0xf]
    %v340 = vld [vmem:[#allocation7 + $0x24] sm:$0xf]
    %v341 = vld [vmem:[#allocation7 + $0x28] sm:$0xf]
    %v342 = vld [vmem:[#allocation7 + $0x2c] sm:$0xf]
    %v343 = vld [vmem:[#allocation7 + $0x30] sm:$0xf]
    %v344 = vld [vmem:[#allocation7 + $0x34] sm:$0xf]
    %v345 = vld [vmem:[#allocation7 + $0x38] sm:$0xf]
    %v346 = vld [vmem:[#allocation7 + $0x3c] sm:$0xf]
    %v347 = vld [vmem:[%s6] sm:$0x1]
    %v349 = vlaneseq
    %v350 = vshrl.u32 %v349, 7
    %v351 = vsub.s32 0, %v350
    %v352 = vrot.slane %v347, %v351
    %v370 = vunpack.c.l.b16 %v331
    %v371 = vunpack.c.l.b16 %v332
    %v372 = vunpack.c.l.b16 %v333
    %v373 = vunpack.c.l.b16 %v334
    %v374 = vunpack.c.l.b16 %v335
    %v375 = vunpack.c.l.b16 %v336
    %v376 = vunpack.c.l.b16 %v337
    %v377 = vunpack.c.l.b16 %v338
    %v378 = vunpack.c.l.b16 %v339
    %v379 = vunpack.c.l.b16 %v340
    %v380 = vunpack.c.l.b16 %v341
    %v381 = vunpack.c.l.b16 %v342
    %v382 = vunpack.c.l.b16 %v343
    %v383 = vunpack.c.l.b16 %v344
    %v384 = vunpack.c.l.b16 %v345
    %v385 = vunpack.c.l.b16 %v346
    %v386 = vpack.c.b16 %v371, %v370
    %v387 = vpack.c.b16 %v373, %v372
    %v388 = vpack.c.b16 %v375, %v374
    %v389 = vpack.c.b16 %v377, %v376
    %v390 = vpack.c.b16 %v379, %v378
    %v391 = vpack.c.b16 %v381, %v380
    %v392 = vpack.c.b16 %v383, %v382
    %v393 = vpack.c.b16 %v385, %v384
    %402 = vmatprep.subr.bf16.mxu0 0
    %403 = vmatpush1.bf16.msra.mxu0 %v393
    %404 = vmatprep.subr.bf16.mxu0 0
    %405 = vmatpush1.bf16.msra.mxu0 %v392
    %406 = vmatprep.subr.bf16.mxu0 0
    %407 = vmatpush1.bf16.msra.mxu0 %v391
    %408 = vmatprep.subr.bf16.mxu0 0
    %409 = vmatpush1.bf16.msra.mxu0 %v390
    %410 = vmatprep.subr.bf16.mxu0 0
    %411 = vmatpush1.bf16.msra.mxu0 %v389
    %412 = vmatprep.subr.bf16.mxu0 0
    %413 = vmatpush1.bf16.msra.mxu0 %v388
    %414 = vmatprep.subr.bf16.mxu0 0
    %415 = vmatpush1.bf16.msra.mxu0 %v387
    %416 = vmatprep.subr.bf16.mxu0 0
    %417 = vmatpush1.bf16.msra.mxu0 %v386
    %418 = vmatprep.subr.bf16.mxu0 0
    %419 = vmatpush2.bf16.msra.mxu0 0
    %420 = vmatprep.subr.bf16.mxu0 0
    %421 = vmatpush2.bf16.msra.mxu0 0
    %422 = vmatprep.subr.bf16.mxu0 0
    %423 = vmatpush2.bf16.msra.mxu0 0
    %424 = vmatprep.subr.bf16.mxu0 0
    %425 = vmatpush2.bf16.msra.mxu0 0
    %426 = vmatprep.subr.bf16.mxu0 0
    %427 = vmatpush2.bf16.msra.mxu0 0
    %428 = vmatprep.subr.bf16.mxu0 0
    %429 = vmatpush2.bf16.msra.mxu0 0
    %430 = vmatprep.subr.bf16.mxu0 0
    %431 = vmatpush2.bf16.msra.mxu0 0
    %432 = vmatprep.subr.bf16.mxu0 0
    %433 = vmatpush2.bf16.msra.mxu0 0
    %434 = vmatprep.mubr.bf16.mxu0 0
    %435 = vmatmul.mubr.bf16.gmra.mxu0 %v330
    %v436 = vpop.f32.mrf.mxu0
    %v437 = vadd.f32 %v352, %v436
    %v438 = vpop.f32.mrf.mxu0
    %v439 = vpop.f32.mrf.mxu0
    %v440 = vpop.f32.mrf.mxu0
    %441 = vdwg.mxu0
    %v442 = vpack.c.bf16 %v437, %v437
    %v443 = vld [vmem:[%s7] sm:$0xf]
    %v444 = vld [vmem:[%s7 + $0x4] sm:$0xf]
    %v445 = vld [vmem:[%s7 + $0x8] sm:$0xf]
    %v446 = vld [vmem:[%s7 + $0xc] sm:$0xf]
    %v447 = vld [vmem:[%s7 + $0x10] sm:$0xf]
    %v448 = vld [vmem:[%s7 + $0x14] sm:$0xf]
    %v449 = vld [vmem:[%s7 + $0x18] sm:$0xf]
    %v450 = vld [vmem:[%s7 + $0x1c] sm:$0xf]
    %v451 = vld [vmem:[%s7 + $0x20] sm:$0xf]
    %v452 = vld [vmem:[%s7 + $0x24] sm:$0xf]
    %v453 = vld [vmem:[%s7 + $0x28] sm:$0xf]
    %v454 = vld [vmem:[%s7 + $0x2c] sm:$0xf]
    %v455 = vld [vmem:[%s7 + $0x30] sm:$0xf]
    %v456 = vld [vmem:[%s7 + $0x34] sm:$0xf]
    %v457 = vld [vmem:[%s7 + $0x38] sm:$0xf]
    %v458 = vld [vmem:[%s7 + $0x3c] sm:$0xf]
    %v459 = vld [vmem:[%s8] sm:$0x1]
    %v461 = vlaneseq
    %v462 = vshrl.u32 %v461, 7
    %v463 = vsub.s32 0, %v462
    %v464 = vrot.slane %v459, %v463
    %v482 = vunpack.c.l.b16 %v443
    %v483 = vunpack.c.l.b16 %v444
    %v484 = vunpack.c.l.b16 %v445
    %v485 = vunpack.c.l.b16 %v446
    %v486 = vunpack.c.l.b16 %v447
    %v487 = vunpack.c.l.b16 %v448
    %v488 = vunpack.c.l.b16 %v449
    %v489 = vunpack.c.l.b16 %v450
    %v490 = vunpack.c.l.b16 %v451
    %v491 = vunpack.c.l.b16 %v452
    %v492 = vunpack.c.l.b16 %v453
    %v493 = vunpack.c.l.b16 %v454
    %v494 = vunpack.c.l.b16 %v455
    %v495 = vunpack.c.l.b16 %v456
    %v496 = vunpack.c.l.b16 %v457
    %v497 = vunpack.c.l.b16 %v458
    %v498 = vpack.c.b16 %v483, %v482
    %v499 = vpack.c.b16 %v485, %v484
    %v500 = vpack.c.b16 %v487, %v486
    %v501 = vpack.c.b16 %v489, %v488
    %v502 = vpack.c.b16 %v491, %v490
    %v503 = vpack.c.b16 %v493, %v492
    %v504 = vpack.c.b16 %v495, %v494
    %v505 = vpack.c.b16 %v497, %v496
    %514 = vmatprep.subr.bf16.mxu0 0
    %515 = vmatpush1.bf16.msra.mxu0 %v505
    %516 = vmatprep.subr.bf16.mxu0 0
    %517 = vmatpush1.bf16.msra.mxu0 %v504
    %518 = vmatprep.subr.bf16.mxu0 0
    %519 = vmatpush1.bf16.msra.mxu0 %v503
    %520 = vmatprep.subr.bf16.mxu0 0
    %521 = vmatpush1.bf16.msra.mxu0 %v502
    %522 = vmatprep.subr.bf16.mxu0 0
    %523 = vmatpush1.bf16.msra.mxu0 %v501
    %524 = vmatprep.subr.bf16.mxu0 0
    %525 = vmatpush1.bf16.msra.mxu0 %v500
    %526 = vmatprep.subr.bf16.mxu0 0
    %527 = vmatpush1.bf16.msra.mxu0 %v499
    %528 = vmatprep.subr.bf16.mxu0 0
    %529 = vmatpush1.bf16.msra.mxu0 %v498
    %530 = vmatprep.subr.bf16.mxu0 0
    %531 = vmatpush2.bf16.msra.mxu0 0
    %532 = vmatprep.subr.bf16.mxu0 0
    %533 = vmatpush2.bf16.msra.mxu0 0
    %534 = vmatprep.subr.bf16.mxu0 0
    %535 = vmatpush2.bf16.msra.mxu0 0
    %536 = vmatprep.subr.bf16.mxu0 0
    %537 = vmatpush2.bf16.msra.mxu0 0
    %538 = vmatprep.subr.bf16.mxu0 0
    %539 = vmatpush2.bf16.msra.mxu0 0
    %540 = vmatprep.subr.bf16.mxu0 0
    %541 = vmatpush2.bf16.msra.mxu0 0
    %542 = vmatprep.subr.bf16.mxu0 0
    %543 = vmatpush2.bf16.msra.mxu0 0
    %544 = vmatprep.subr.bf16.mxu0 0
    %545 = vmatpush2.bf16.msra.mxu0 0
    %546 = vmatprep.mubr.bf16.mxu0 0
    %547 = vmatmul.mubr.bf16.gmra.mxu0 %v442
    %v548 = vpop.f32.mrf.mxu0
    %v549 = vadd.f32 %v464, %v548
    %v550 = vpop.f32.mrf.mxu0
    %v551 = vpop.f32.mrf.mxu0
    %v552 = vpop.f32.mrf.mxu0
    %553 = vdwg.mxu0
    %v554 = vpack.c.bf16 %v549, %v549
    %555 = vst [vmem:[%s11] sm:$0xf] %v554
    %vm556 = vcmask 1043456
    %v557 = vsel %vm556, %v437, 0.0
    %v558 = vrot.slane %v557, 4
    %v559 = vadd.f32 %v557, %v558
    %v560 = vrot.slane %v559, 2
    %v561 = vadd.f32 %v559, %v560
    %v562 = vrot.slane %v561, 1
    %v563 = vadd.f32 %v561, %v562
    %v564 = vrcp.pop 4.0
    %v565 = vmul.f32 %v563, %v564
    %v567 = vrot.slane %v437, 4
    %v569 = vsel %vm556, %v567, 0.0
    %v570 = vrot.slane %v569, 4
    %v571 = vadd.f32 %v569, %v570
    %v572 = vrot.slane %v571, 2
    %v573 = vadd.f32 %v571, %v572
    %v574 = vrot.slane %v573, 1
    %v575 = vadd.f32 %v573, %v574
    %v576 = vmul.f32 %v575, %v564
    %vm577 = vcmask 1040384
    %v578 = vsel %vm577, %v565, %v576
    %v579 = vpack.c.bf16 %v578, %v578
    %v580 = vld [vmem:[#allocation8] sm:$0xf]
    %v581 = vld [vmem:[#allocation8 + $0x4] sm:$0xf]
    %v582 = vld [vmem:[#allocation8 + $0x8] sm:$0xf]
    %v583 = vld [vmem:[#allocation8 + $0xc] sm:$0xf]
    %v584 = vld [vmem:[#allocation8 + $0x10] sm:$0xf]
    %v585 = vld [vmem:[#allocation8 + $0x14] sm:$0xf]
    %v586 = vld [vmem:[#allocation8 + $0x18] sm:$0xf]
    %v587 = vld [vmem:[#allocation8 + $0x1c] sm:$0xf]
    %v588 = vld [vmem:[#allocation8 + $0x20] sm:$0xf]
    %v589 = vld [vmem:[#allocation8 + $0x24] sm:$0xf]
    %v590 = vld [vmem:[#allocation8 + $0x28] sm:$0xf]
    %v591 = vld [vmem:[#allocation8 + $0x2c] sm:$0xf]
    %v592 = vld [vmem:[#allocation8 + $0x30] sm:$0xf]
    %v593 = vld [vmem:[#allocation8 + $0x34] sm:$0xf]
    %v594 = vld [vmem:[#allocation8 + $0x38] sm:$0xf]
    %v595 = vld [vmem:[#allocation8 + $0x3c] sm:$0xf]
    %v596 = vld [vmem:[%s10] sm:$0x1]
    %v598 = vlaneseq
    %v599 = vshrl.u32 %v598, 7
    %v600 = vsub.s32 0, %v599
    %v601 = vrot.slane %v596, %v600
    %v619 = vunpack.c.l.b16 %v580
    %v620 = vunpack.c.l.b16 %v581
    %v621 = vunpack.c.l.b16 %v582
    %v622 = vunpack.c.l.b16 %v583
    %v623 = vunpack.c.l.b16 %v584
    %v624 = vunpack.c.l.b16 %v585
    %v625 = vunpack.c.l.b16 %v586
    %v626 = vunpack.c.l.b16 %v587
    %v627 = vunpack.c.l.b16 %v588
    %v628 = vunpack.c.l.b16 %v589
    %v629 = vunpack.c.l.b16 %v590
    %v630 = vunpack.c.l.b16 %v591
    %v631 = vunpack.c.l.b16 %v592
    %v632 = vunpack.c.l.b16 %v593
    %v633 = vunpack.c.l.b16 %v594
    %v634 = vunpack.c.l.b16 %v595
    %v635 = vpack.c.b16 %v620, %v619
    %v636 = vpack.c.b16 %v622, %v621
    %v637 = vpack.c.b16 %v624, %v623
    %v638 = vpack.c.b16 %v626, %v625
    %v639 = vpack.c.b16 %v628, %v627
    %v640 = vpack.c.b16 %v630, %v629
    %v641 = vpack.c.b16 %v632, %v631
    %v642 = vpack.c.b16 %v634, %v633
    %651 = vmatprep.subr.bf16.mxu0 0
    %652 = vmatpush1.bf16.msra.mxu0 %v642
    %653 = vmatprep.subr.bf16.mxu0 0
    %654 = vmatpush1.bf16.msra.mxu0 %v641
    %655 = vmatprep.subr.bf16.mxu0 0
    %656 = vmatpush1.bf16.msra.mxu0 %v640
    %657 = vmatprep.subr.bf16.mxu0 0
    %658 = vmatpush1.bf16.msra.mxu0 %v639
    %659 = vmatprep.subr.bf16.mxu0 0
    %660 = vmatpush1.bf16.msra.mxu0 %v638
    %661 = vmatprep.subr.bf16.mxu0 0
    %662 = vmatpush1.bf16.msra.mxu0 %v637
    %663 = vmatprep.subr.bf16.mxu0 0
    %664 = vmatpush1.bf16.msra.mxu0 %v636
    %665 = vmatprep.subr.bf16.mxu0 0
    %666 = vmatpush1.bf16.msra.mxu0 %v635
    %667 = vmatprep.subr.bf16.mxu0 0
    %668 = vmatpush2.bf16.msra.mxu0 0
    %669 = vmatprep.subr.bf16.mxu0 0
    %670 = vmatpush2.bf16.msra.mxu0 0
    %671 = vmatprep.subr.bf16.mxu0 0
    %672 = vmatpush2.bf16.msra.mxu0 0
    %673 = vmatprep.subr.bf16.mxu0 0
    %674 = vmatpush2.bf16.msra.mxu0 0
    %675 = vmatprep.subr.bf16.mxu0 0
    %676 = vmatpush2.bf16.msra.mxu0 0
    %677 = vmatprep.subr.bf16.mxu0 0
    %678 = vmatpush2.bf16.msra.mxu0 0
    %679 = vmatprep.subr.bf16.mxu0 0
    %680 = vmatpush2.bf16.msra.mxu0 0
    %681 = vmatprep.subr.bf16.mxu0 0
    %682 = vmatpush2.bf16.msra.mxu0 0
    %683 = vmatprep.mubr.bf16.mxu0 0
    %684 = vmatmul.mubr.bf16.gmra.mxu0 %v579
    %v685 = vpop.f32.mrf.mxu0
    %v686 = vadd.f32 %v601, %v685
    %v687 = vpop.f32.mrf.mxu0
    %v688 = vpop.f32.mrf.mxu0
    %v689 = vpop.f32.mrf.mxu0
    %690 = vdwg.mxu0
    %691 = vst [vmem:[#allocation10] sm:$0x3] %v686
    // Predicated region
    $region62: #{adverserial_autoencoder_forward.1} parent=1 // pred_check
      _
    $region63: #{adverserial_autoencoder_forward.1} parent=1 // pred_check_branch
      %693 = sbr.rel (0) target = $region65
    $region64: #{adverserial_autoencoder_forward.1} parent=1 // pred_region
      _
    $region65: #{adverserial_autoencoder_forward.1} parent=1 // pred_fallthru
      _
    // Predicated region
    $region66: #{adverserial_autoencoder_forward.1} parent=1 // pred_check
      _
    $region67: #{adverserial_autoencoder_forward.1} parent=1 // pred_check_branch
      %695 = sbr.rel (0) target = $region69
    $region68: #{adverserial_autoencoder_forward.1} parent=1 // pred_region
      %s697 = ssub.s32 32, 32
      %698 = vsyncadd [#allocation4], %s697
      %s700 = sshll.u32 [#allocation10], 4
      %s701 = int_to_ptr.vmem [resolvable:$true] %s700
      %703 = dma.vmem_to_hbm [thread:$0]  %s701, 32, %s12, [#allocation4]
    $region69: #{adverserial_autoencoder_forward.1} parent=1 // pred_fallthru
      _
    // Predicated region
    $region70: #{adverserial_autoencoder_forward.1} parent=1 // pred_check
      _
    $region71: #{adverserial_autoencoder_forward.1} parent=1 // pred_check_branch
      %705 = sbr.rel (0) target = $region73
    $region72: #{adverserial_autoencoder_forward.1} parent=1 // pred_region
      _
    $region73: #{adverserial_autoencoder_forward.1} parent=1 // pred_fallthru
      _
    // Predicated region
    $region74: #{adverserial_autoencoder_forward.1} parent=1 // pred_check
      _
    $region75: #{adverserial_autoencoder_forward.1} parent=1 // pred_check_branch
      %707 = sbr.rel (0) target = $region77
    $region76: #{adverserial_autoencoder_forward.1} parent=1 // pred_region
      %708 = dma.done [#allocation4], 32
    $region77: #{adverserial_autoencoder_forward.1} parent=1 // pred_fallthru
      _
    %709 = vsyncpa [#allocation3], 1
    %710 = vsyncpa [#allocation6], 1
    %711 = vsyncpa [#allocation9], 1
    %712 = vsyncpa [#allocation4], 1

</llo_original>
